<compile_context>
chip_gen: v7x
topology: tpu7x:2x2x1
jax: 0.10.0
libtpu: 0.0.40
codegen_flags: <defaults>
</compile_context>

<pallas_src>
import functools
import math

import jax
import jax.numpy as jnp
from jax.experimental import pallas as pl
from jax.experimental.pallas import tpu as pltpu

LN_EPS = 1e-5


# ---------------------------------------------------------------------------
# Pallas kernel: fused strided-conv (im2col matmul) + bias + LayerNorm
# ---------------------------------------------------------------------------
def _patch_embed_kernel(xp_ref, w_ref, aff_ref, out_ref, *,
                        H_out, W_out, KH, KW, Cin, stride):
    """xp_ref : (1, Hp, Wp*Cin)   zero-padded input, one batch element, (W, Cin) fused on lanes
       w_ref  : (KH*KW*Cin, Cout) conv weight, rows ordered (kh, kw, ci)
       aff_ref: (3, Cout)         rows = [conv bias, LayerNorm gamma, LayerNorm beta]
       out_ref: (1, H_out*W_out, Cout)
    """
    K = KH * KW * Cin
    P = H_out * W_out

    # im2col: each output position's receptive field is a CONTIGUOUS (KH, KW*Cin) slice
    # because W and Cin are fused on the lane axis.  Unrolled at trace time (P = 16).
    wins = []
    for oh in range(H_out):
        r0 = oh * stride
        for ow in range(W_out):
            c0 = ow * stride * Cin
            wins.append(xp_ref[0, r0:r0 + KH, c0:c0 + KW * Cin])   # (KH, KW*Cin)
    patches = jnp.stack(wins, axis=0).reshape(P, K)                # (P, K)

    # Single MXU matmul with full K depth (K = 7*7*Cin), f32 accumulation, then conv bias.
    y = jnp.dot(patches, w_ref[...], preferred_element_type=jnp.float32)
    y = y + aff_ref[0:1, :]

    # LayerNorm over the embedding dim (biased variance, eps = 1e-5), fused in-kernel.
    mu = jnp.mean(y, axis=-1, keepdims=True)
    var = jnp.mean(jnp.square(y - mu), axis=-1, keepdims=True)
    yn = (y - mu) * jax.lax.rsqrt(var + LN_EPS)

    # One lane-dense, full-tile store (Cout = 128 on lanes).
    out_ref[0] = yn * aff_ref[1:2, :] + aff_ref[2:3, :]


# ---------------------------------------------------------------------------
# wrapper (layout plumbing + pallas_call)
# ---------------------------------------------------------------------------
def overlap_patch_embed(x_nchw, params, *, patch_size=7, stride=4):
    """Returns (tokens, H_out, W_out) with tokens shape (N, H_out*W_out, embed_dim),
    matching the PyTorch forward `(x.flatten(2).transpose(1,2) after conv+LayerNorm, H, W)`."""
    w_mat, affine = params
    N, Cin, H, W = x_nchw.shape
    KH = KW = patch_size
    pad = patch_size // 2
    H_out = (H + 2 * pad - KH) // stride + 1
    W_out = (W + 2 * pad - KW) // stride + 1
    Cout = w_mat.shape[-1]
    Hp, Wp = H + 2 * pad, W + 2 * pad

    # Layout plumbing (glue): NCHW -> NHWC, zero-pad (conv padding), fuse (W, Cin) on lanes.
    x = jnp.transpose(x_nchw, (0, 2, 3, 1)).astype(jnp.float32)
    xp = jnp.pad(x, ((0, 0), (pad, pad), (pad, pad), (0, 0)))
    xp = xp.reshape(N, Hp, Wp * Cin)

    kernel = functools.partial(
        _patch_embed_kernel,
        H_out=H_out, W_out=W_out, KH=KH, KW=KW, Cin=Cin, stride=stride)

    tokens = pl.pallas_call(
        kernel,
        out_shape=jax.ShapeDtypeStruct((N, H_out * W_out, Cout), jnp.float32),
        grid=(N,),
        in_specs=[
            pl.BlockSpec((1, Hp, Wp * Cin), lambda n: (n, 0, 0)),
            pl.BlockSpec((KH * KW * Cin, Cout), lambda n: (0, 0)),
            pl.BlockSpec((3, Cout), lambda n: (0, 0)),
        ],
        out_specs=pl.BlockSpec((1, H_out * W_out, Cout), lambda n: (n, 0, 0)),
        compiler_params=pltpu.CompilerParams(
            dimension_semantics=("parallel",)),
    )(xp, w_mat, affine)
    return tokens, H_out, W_out


# ---------------------------------------------------------------------------
# deterministic parameter construction (mirrors _init_weights; no checkpoints)
# ---------------------------------------------------------------------------
def make_params(key, in_chans, embed_dim, patch_size=7):
    KH = KW = patch_size
    fan_out = KH * KW * embed_dim
    # TODO(synk): Conv2d init uses plain normal(0, sqrt(2/fan_out)); trunc_normal_ only
    # applies to nn.Linear in the reference and is construction-time only (not forward).
    w_oihw = math.sqrt(2.0 / fan_out) * jax.random.normal(
        key, (embed_dim, in_chans, KH, KW), jnp.float32)          # PyTorch OIHW
    b = jnp.zeros((embed_dim,), jnp.float32)                       # conv bias init 0
    gamma = jnp.ones((embed_dim,), jnp.float32)                    # LayerNorm weight init 1
    beta = jnp.zeros((embed_dim,), jnp.float32)                    # LayerNorm bias init 0
    # OIHW -> (kh, kw, ci, co) -> (K, Cout), matching the im2col row order (kh, kw, ci).
    w_mat = jnp.transpose(w_oihw, (2, 3, 1, 0)).reshape(KH * KW * in_chans, embed_dim)
    affine = jnp.stack([b, gamma, beta], axis=0)                   # (3, Cout)
    return (w_mat, affine)


# ---------------------------------------------------------------------------
# pure-JAX reference for correctness
# ---------------------------------------------------------------------------
def _reference(x_nchw, params, *, patch_size=7, stride=4):
    w_mat, affine = params
    Cin = x_nchw.shape[1]
    KH = KW = patch_size
    Cout = w_mat.shape[-1]
    pad = patch_size // 2
    w_oihw = jnp.transpose(w_mat.reshape(KH, KW, Cin, Cout), (3, 2, 0, 1))
    y = jax.lax.conv_general_dilated(
        x_nchw, w_oihw, window_strides=(stride, stride),
        padding=[(pad, pad), (pad, pad)],
        dimension_numbers=("NCHW", "OIHW", "NCHW"))
    y = y + affine[0][None, :, None, None]
    N, C, Ho, Wo = y.shape
    y = jnp.transpose(y.reshape(N, C, Ho * Wo), (0, 2, 1))
    mu = jnp.mean(y, axis=-1, keepdims=True)
    var = jnp.mean(jnp.square(y - mu), axis=-1, keepdims=True)
    return (y - mu) * jax.lax.rsqrt(var + LN_EPS) * affine[1] + affine[2]


if __name__ == "__main__":
    N, in_chans, H, W = 2, 3, 16, 16
    embed_dim = 128                     # lane-dense embedding width
    patch_size, stride = 7, 4

    key = jax.random.PRNGKey(0)
    pkey, dkey = jax.random.split(key)
    params = make_params(pkey, in_chans, embed_dim, patch_size)
    x = jax.random.normal(dkey, (N, in_chans, H, W), jnp.float32)

    tokens, H_out, W_out = overlap_patch_embed(
        x, params, patch_size=patch_size, stride=stride)
    tokens = jax.block_until_ready(tokens)

    assert H_out == 4 and W_out == 4
    assert tokens.shape == (N, H_out * W_out, embed_dim)
    assert bool(jnp.isfinite(tokens).all())

    ref = _reference(x, params, patch_size=patch_size, stride=stride)
    assert bool(jnp.allclose(tokens, ref, atol=2e-3, rtol=2e-3))

    print("KERNEL_OK")
</pallas_src>

<mosaic_0001>
module attributes {stable_mosaic.version = 11 : i64} {
  func.func @_patch_embed_kernel(%arg0: i32, %arg1: memref<1x22x66xf32, #tpu.memory_space<vmem>>, %arg2: memref<147x128xf32, #tpu.memory_space<vmem>>, %arg3: memref<3x128xf32, #tpu.memory_space<vmem>>, %arg4: memref<1x16x128xf32, #tpu.memory_space<vmem>>) attributes {dimension_semantics = [#tpu.dimension_semantics<parallel>], iteration_bounds = array<i64: 2>, scalar_prefetch = 0 : i64, scratch_operands = 0 : i64, tpu.core_type = #tpu.core_type<tc>, window_params = [{transform_indices = @transform_0, window_bounds = array<i64: 1, 22, 66>}, {pipeline_mode = #tpu.pipeline_mode<synchronous>, transform_indices = @transform_1, window_bounds = array<i64: 147, 128>}, {pipeline_mode = #tpu.pipeline_mode<synchronous>, transform_indices = @transform_2, window_bounds = array<i64: 3, 128>}, {transform_indices = @transform_3, window_bounds = array<i64: 1, 16, 128>}]} {
    %c0 = arith.constant 0 : index
    %c0_0 = arith.constant 0 : index
    %c0_1 = arith.constant 0 : index
    %0 = vector.load %arg1[%c0, %c0_0, %c0_1] : memref<1x22x66xf32, #tpu.memory_space<vmem>>, vector<1x7x21xf32>
    %1 = vector.shape_cast %0 : vector<1x7x21xf32> to vector<7x21xf32>
    %c0_2 = arith.constant 0 : index
    %c0_3 = arith.constant 0 : index
    %c12 = arith.constant 12 : index
    %2 = vector.load %arg1[%c0_2, %c0_3, %c12] : memref<1x22x66xf32, #tpu.memory_space<vmem>>, vector<1x7x21xf32>
    %3 = vector.shape_cast %2 : vector<1x7x21xf32> to vector<7x21xf32>
    %c0_4 = arith.constant 0 : index
    %c0_5 = arith.constant 0 : index
    %c24 = arith.constant 24 : index
    %4 = vector.load %arg1[%c0_4, %c0_5, %c24] : memref<1x22x66xf32, #tpu.memory_space<vmem>>, vector<1x7x21xf32>
    %5 = vector.shape_cast %4 : vector<1x7x21xf32> to vector<7x21xf32>
    %c0_6 = arith.constant 0 : index
    %c0_7 = arith.constant 0 : index
    %c36 = arith.constant 36 : index
    %6 = vector.load %arg1[%c0_6, %c0_7, %c36] : memref<1x22x66xf32, #tpu.memory_space<vmem>>, vector<1x7x21xf32>
    %7 = vector.shape_cast %6 : vector<1x7x21xf32> to vector<7x21xf32>
    %c0_8 = arith.constant 0 : index
    %c4 = arith.constant 4 : index
    %c0_9 = arith.constant 0 : index
    %8 = vector.load %arg1[%c0_8, %c4, %c0_9] : memref<1x22x66xf32, #tpu.memory_space<vmem>>, vector<1x7x21xf32>
    %9 = vector.shape_cast %8 : vector<1x7x21xf32> to vector<7x21xf32>
    %c0_10 = arith.constant 0 : index
    %c4_11 = arith.constant 4 : index
    %c12_12 = arith.constant 12 : index
    %10 = vector.load %arg1[%c0_10, %c4_11, %c12_12] : memref<1x22x66xf32, #tpu.memory_space<vmem>>, vector<1x7x21xf32>
    %11 = vector.shape_cast %10 : vector<1x7x21xf32> to vector<7x21xf32>
    %c0_13 = arith.constant 0 : index
    %c4_14 = arith.constant 4 : index
    %c24_15 = arith.constant 24 : index
    %12 = vector.load %arg1[%c0_13, %c4_14, %c24_15] : memref<1x22x66xf32, #tpu.memory_space<vmem>>, vector<1x7x21xf32>
    %13 = vector.shape_cast %12 : vector<1x7x21xf32> to vector<7x21xf32>
    %c0_16 = arith.constant 0 : index
    %c4_17 = arith.constant 4 : index
    %c36_18 = arith.constant 36 : index
    %14 = vector.load %arg1[%c0_16, %c4_17, %c36_18] : memref<1x22x66xf32, #tpu.memory_space<vmem>>, vector<1x7x21xf32>
    %15 = vector.shape_cast %14 : vector<1x7x21xf32> to vector<7x21xf32>
    %c0_19 = arith.constant 0 : index
    %c8 = arith.constant 8 : index
    %c0_20 = arith.constant 0 : index
    %16 = vector.load %arg1[%c0_19, %c8, %c0_20] : memref<1x22x66xf32, #tpu.memory_space<vmem>>, vector<1x7x21xf32>
    %17 = vector.shape_cast %16 : vector<1x7x21xf32> to vector<7x21xf32>
    %c0_21 = arith.constant 0 : index
    %c8_22 = arith.constant 8 : index
    %c12_23 = arith.constant 12 : index
    %18 = vector.load %arg1[%c0_21, %c8_22, %c12_23] : memref<1x22x66xf32, #tpu.memory_space<vmem>>, vector<1x7x21xf32>
    %19 = vector.shape_cast %18 : vector<1x7x21xf32> to vector<7x21xf32>
    %c0_24 = arith.constant 0 : index
    %c8_25 = arith.constant 8 : index
    %c24_26 = arith.constant 24 : index
    %20 = vector.load %arg1[%c0_24, %c8_25, %c24_26] : memref<1x22x66xf32, #tpu.memory_space<vmem>>, vector<1x7x21xf32>
    %21 = vector.shape_cast %20 : vector<1x7x21xf32> to vector<7x21xf32>
    %c0_27 = arith.constant 0 : index
    %c8_28 = arith.constant 8 : index
    %c36_29 = arith.constant 36 : index
    %22 = vector.load %arg1[%c0_27, %c8_28, %c36_29] : memref<1x22x66xf32, #tpu.memory_space<vmem>>, vector<1x7x21xf32>
    %23 = vector.shape_cast %22 : vector<1x7x21xf32> to vector<7x21xf32>
    %c0_30 = arith.constant 0 : index
    %c12_31 = arith.constant 12 : index
    %c0_32 = arith.constant 0 : index
    %24 = vector.load %arg1[%c0_30, %c12_31, %c0_32] : memref<1x22x66xf32, #tpu.memory_space<vmem>>, vector<1x7x21xf32>
    %25 = vector.shape_cast %24 : vector<1x7x21xf32> to vector<7x21xf32>
    %c0_33 = arith.constant 0 : index
    %c12_34 = arith.constant 12 : index
    %c12_35 = arith.constant 12 : index
    %26 = vector.load %arg1[%c0_33, %c12_34, %c12_35] : memref<1x22x66xf32, #tpu.memory_space<vmem>>, vector<1x7x21xf32>
    %27 = vector.shape_cast %26 : vector<1x7x21xf32> to vector<7x21xf32>
    %c0_36 = arith.constant 0 : index
    %c12_37 = arith.constant 12 : index
    %c24_38 = arith.constant 24 : index
    %28 = vector.load %arg1[%c0_36, %c12_37, %c24_38] : memref<1x22x66xf32, #tpu.memory_space<vmem>>, vector<1x7x21xf32>
    %29 = vector.shape_cast %28 : vector<1x7x21xf32> to vector<7x21xf32>
    %c0_39 = arith.constant 0 : index
    %c12_40 = arith.constant 12 : index
    %c36_41 = arith.constant 36 : index
    %30 = vector.load %arg1[%c0_39, %c12_40, %c36_41] : memref<1x22x66xf32, #tpu.memory_space<vmem>>, vector<1x7x21xf32>
    %31 = vector.shape_cast %30 : vector<1x7x21xf32> to vector<7x21xf32>
    %32 = vector.shape_cast %1 : vector<7x21xf32> to vector<1x7x21xf32>
    %33 = vector.shape_cast %3 : vector<7x21xf32> to vector<1x7x21xf32>
    %34 = vector.shape_cast %5 : vector<7x21xf32> to vector<1x7x21xf32>
    %35 = vector.shape_cast %7 : vector<7x21xf32> to vector<1x7x21xf32>
    %36 = vector.shape_cast %9 : vector<7x21xf32> to vector<1x7x21xf32>
    %37 = vector.shape_cast %11 : vector<7x21xf32> to vector<1x7x21xf32>
    %38 = vector.shape_cast %13 : vector<7x21xf32> to vector<1x7x21xf32>
    %39 = vector.shape_cast %15 : vector<7x21xf32> to vector<1x7x21xf32>
    %40 = vector.shape_cast %17 : vector<7x21xf32> to vector<1x7x21xf32>
    %41 = vector.shape_cast %19 : vector<7x21xf32> to vector<1x7x21xf32>
    %42 = vector.shape_cast %21 : vector<7x21xf32> to vector<1x7x21xf32>
    %43 = vector.shape_cast %23 : vector<7x21xf32> to vector<1x7x21xf32>
    %44 = vector.shape_cast %25 : vector<7x21xf32> to vector<1x7x21xf32>
    %45 = vector.shape_cast %27 : vector<7x21xf32> to vector<1x7x21xf32>
    %46 = vector.shape_cast %29 : vector<7x21xf32> to vector<1x7x21xf32>
    %47 = vector.shape_cast %31 : vector<7x21xf32> to vector<1x7x21xf32>
    %48 = tpu.concatenate %32, %33, %34, %35, %36, %37, %38, %39, %40, %41, %42, %43, %44, %45, %46, %47 in 0 : vector<1x7x21xf32>, vector<1x7x21xf32>, vector<1x7x21xf32>, vector<1x7x21xf32>, vector<1x7x21xf32>, vector<1x7x21xf32>, vector<1x7x21xf32>, vector<1x7x21xf32>, vector<1x7x21xf32>, vector<1x7x21xf32>, vector<1x7x21xf32>, vector<1x7x21xf32>, vector<1x7x21xf32>, vector<1x7x21xf32>, vector<1x7x21xf32>, vector<1x7x21xf32> -> vector<16x7x21xf32>
    %49 = vector.shape_cast %48 : vector<16x7x21xf32> to vector<16x147xf32>
    %c0_42 = arith.constant 0 : index
    %c0_43 = arith.constant 0 : index
    %50 = vector.load %arg2[%c0_42, %c0_43] : memref<147x128xf32, #tpu.memory_space<vmem>>, vector<147x128xf32>
    %cst = arith.constant dense<0.000000e+00> : vector<16x128xf32>
    %51 = tpu.matmul %49, %50, %cst {dimension_numbers = #tpu.dot_dimension_numbers<[1], [0], [0], [1], [0, 0, 1, 1], [], []>} : vector<16x147xf32>, vector<147x128xf32>, vector<16x128xf32> -> vector<16x128xf32>
    %c0_44 = arith.constant 0 : index
    %c0_45 = arith.constant 0 : index
    %52 = vector.load %arg3[%c0_44, %c0_45] : memref<3x128xf32, #tpu.memory_space<vmem>>, vector<1x128xf32>
    %53 = vector.broadcast %52 : vector<1x128xf32> to vector<16x128xf32>
    %54 = arith.addf %51, %53 : vector<16x128xf32>
    %cst_46 = arith.constant dense<0.000000e+00> : vector<16xf32>
    %55 = vector.multi_reduction <add>, %54, %cst_46 [1] : vector<16x128xf32> to vector<16xf32>
    %56 = vector.shape_cast %55 : vector<16xf32> to vector<16x1xf32>
    %cst_47 = arith.constant 1.280000e+02 : f32
    %57 = vector.broadcast %cst_47 : f32 to vector<16x1xf32>
    %58 = arith.divf %56, %57 : vector<16x1xf32>
    %59 = vector.broadcast %58 : vector<16x1xf32> to vector<16x128xf32>
    %60 = arith.subf %54, %59 : vector<16x128xf32>
    %61 = arith.mulf %60, %60 : vector<16x128xf32>
    %cst_48 = arith.constant dense<0.000000e+00> : vector<16xf32>
    %62 = vector.multi_reduction <add>, %61, %cst_48 [1] : vector<16x128xf32> to vector<16xf32>
    %63 = vector.shape_cast %62 : vector<16xf32> to vector<16x1xf32>
    %cst_49 = arith.constant 1.280000e+02 : f32
    %64 = vector.broadcast %cst_49 : f32 to vector<16x1xf32>
    %65 = arith.divf %63, %64 : vector<16x1xf32>
    %66 = vector.broadcast %58 : vector<16x1xf32> to vector<16x128xf32>
    %67 = arith.subf %54, %66 : vector<16x128xf32>
    %cst_50 = arith.constant 9.99999974E-6 : f32
    %68 = vector.broadcast %cst_50 : f32 to vector<16x1xf32>
    %69 = arith.addf %65, %68 : vector<16x1xf32>
    %70 = math.rsqrt %69 : vector<16x1xf32>
    %71 = vector.broadcast %70 : vector<16x1xf32> to vector<16x128xf32>
    %72 = arith.mulf %67, %71 : vector<16x128xf32>
    %c1 = arith.constant 1 : index
    %c0_51 = arith.constant 0 : index
    %73 = vector.load %arg3[%c1, %c0_51] : memref<3x128xf32, #tpu.memory_space<vmem>>, vector<1x128xf32>
    %74 = vector.broadcast %73 : vector<1x128xf32> to vector<16x128xf32>
    %75 = arith.mulf %72, %74 : vector<16x128xf32>
    %c2 = arith.constant 2 : index
    %c0_52 = arith.constant 0 : index
    %76 = vector.load %arg3[%c2, %c0_52] : memref<3x128xf32, #tpu.memory_space<vmem>>, vector<1x128xf32>
    %77 = vector.broadcast %76 : vector<1x128xf32> to vector<16x128xf32>
    %78 = arith.addf %75, %77 : vector<16x128xf32>
    %c0_53 = arith.constant 0 : index
    %c0_54 = arith.constant 0 : index
    %c0_55 = arith.constant 0 : index
    %79 = vector.load %arg4[%c0_53, %c0_54, %c0_55] : memref<1x16x128xf32, #tpu.memory_space<vmem>>, vector<1x16x128xf32>
    %80 = vector.shape_cast %79 : vector<1x16x128xf32> to vector<16x128xf32>
    %81 = vector.shape_cast %78 : vector<16x128xf32> to vector<1x16x128xf32>
    tpu.vector_store %arg4[%c0_53, %c0_54, %c0_55], %81 {strides = array<i32>} : memref<1x16x128xf32, #tpu.memory_space<vmem>>, vector<1x16x128xf32>,
    return
  }
  func.func @transform_0(%arg0: i32) -> (i32, i32, i32) {
    %c0_i32 = arith.constant 0 : i32
    %c0_i32_0 = arith.constant 0 : i32
    %c0_i32_1 = arith.constant 0 : i32
    return %arg0, %c0_i32, %c0_i32_0 : i32, i32, i32
  }
  func.func @transform_1(%arg0: i32) -> (i32, i32) {
    %c0_i32 = arith.constant 0 : i32
    %c0_i32_0 = arith.constant 0 : i32
    %c0_i32_1 = arith.constant 0 : i32
    return %c0_i32, %c0_i32_0 : i32, i32
  }
  func.func @transform_2(%arg0: i32) -> (i32, i32) {
    %c0_i32 = arith.constant 0 : i32
    %c0_i32_0 = arith.constant 0 : i32
    %c0_i32_1 = arith.constant 0 : i32
    return %c0_i32, %c0_i32_0 : i32, i32
  }
  func.func @transform_3(%arg0: i32) -> (i32, i32, i32) {
    %c0_i32 = arith.constant 0 : i32
    %c0_i32_0 = arith.constant 0 : i32
    %c0_i32_1 = arith.constant 0 : i32
    return %arg0, %c0_i32, %c0_i32_0 : i32, i32, i32
  }
}

</mosaic_0001>

<llo_original>
// kernel: tpu_custom_call.1
$region0: #{tpu_custom_call.1}
  #allocation0 [shape = 'u32[]', space=smem, size = 0x4, offset = 0x4, fixed_abs, tag = 'smem constant byte address 0x4 - core index']
  #allocation1 [shape = 'u32[144,128]{1,0:T(1,128)}', space=vmem, size = 0x12000, scoped, tag = 'internal scratch']
  %s0 = inlined_call_operand.vmem [shape: f32[2,22,66], index: 0, kind: input, shape index: {}]
  %s1 = inlined_call_operand.hbm [shape: f32[147,128], index: 1, kind: input, shape index: {}]
  %s2 = inlined_call_operand.vmem [shape: f32[3,128], index: 2, kind: input, shape index: {}]
  %s3 = inlined_call_operand.hbm [shape: f32[2,16,128], index: 3, kind: output, shape index: {}]
  %s4 = sld [smem:[#allocation0]]
  $region49: #{tpu_custom_call.1} parent=0
    _
  %s6 = ssub.s32 1, %s4
  %s7 = scalar_select 0, %s6, %s4
  $region1: #{tpu_custom_call.1} parent=0
    #allocation2 [shape = 'u8[77824]{0}', space=vmem, size = 0x13000, scoped, tag = 'input window, operand 1, single buffered']
    #allocation3 [shape = 's32[2]{0}', space=sflag, size = 0x8, scoped, tag = 'scoped memory for tpu_custom_call.1']
    #allocation4 [shape = 's32[2]{0}', space=sflag, size = 0x8, scoped, tag = 'scoped memory for tpu_custom_call.1']
    #allocation5 [shape = 'u8[16384]{0}', space=vmem, size = 0x4000, scoped, tag = 'output window, operand 0']
    %8 = vsyncpa [#allocation3], 0
    %9 = vsyncpa [#allocation4], 0
    %s10 = scalar_lea.sflag [#allocation4], 1
    %11 = vsyncpa %s10, 0
    loop: start=0, step=1, limit=4
    $region2: #{tpu_custom_call.1} parent=1 // loop_pre_header
      _
    $region3: #{tpu_custom_call.1} parent=1 // loop_header
      %s13 = sphi 0, %s17
      %p14 = scmp.ge.s32.totalorder %s13, 4
      %s23 = sphi 0, %s25
      %s26 = sphi 0, %s23
      %s27 = sphi 0, %s26
      %s43 = sphi 0, %s27
      %s47 = sphi 0, %s47
      %s49 = sphi 0, %s47
      %s50 = sphi 0, %s49
      %s64 = sphi 0, %s50
      %s68 = sphi 0, %s68
      %s70 = sphi 0, %s68
      %s71 = sphi 0, %s70
      %s85 = sphi 0, %s71
      %s91 = sphi 0, %s93
      %s94 = sphi 0, %s91
      %s95 = sphi 0, %s94
      %s111 = sphi 0, %s95
    $region4: #{tpu_custom_call.1} parent=1 // loop_header_branch
      %16 = sbr.rel (%p14) target = $region8
    $region5: #{tpu_custom_call.1} parent=1 // loop_body
      %s18 = ssub.s32 %s13, 1
      %s19 = ssub.s32 %s13, 2
      %s20 = sadd.s32 %s13, 1
      %s21 = ssub.s32 %s13, %s20
      %p22 = scmp.eq.s32.totalorder %s21, 0
      %s24 = sadd.s32 %s23, 1
      %s25 = scalar_select %p22, %s23, %s24
      %p28 = pneg %p22
      %p29 = scmp.eq.s32.totalorder %s13, 1
      %p30 = por %p28, %p29
      %p31 = scmp.ne.s32.totalorder %s23, %s26
      %p32 = scmp.eq.s32.totalorder %s13, 0
      %p33 = por %p31, %p32
      %p34 = scmp.ne.s32.totalorder %s23, %s26
      %p35 = scmp.eq.s32.totalorder %s18, 1
      %p36 = por %p34, %p35
      %p37 = scmp.ne.s32.totalorder %s26, %s27
      %p38 = scmp.eq.s32.totalorder %s18, 0
      %p39 = por %p37, %p38
      %p40 = scmp.ne.s32.totalorder %s26, %s27
      %p41 = scmp.eq.s32.totalorder %s19, 1
      %p42 = por %p40, %p41
      %p44 = scmp.ne.s32.totalorder %s27, %s43
      %p45 = scmp.eq.s32.totalorder %s19, 0
      %p46 = por %p44, %p45
      %s48 = sadd.s32 %s47, 1
      %p51 = scmp.eq.s32.totalorder %s13, 1
      %p52 = scmp.ne.s32.totalorder %s47, %s49
      %p53 = scmp.eq.s32.totalorder %s13, 0
      %p54 = por %p52, %p53
      %p55 = scmp.ne.s32.totalorder %s47, %s49
      %p56 = scmp.eq.s32.totalorder %s18, 1
      %p57 = por %p55, %p56
      %p58 = scmp.ne.s32.totalorder %s49, %s50
      %p59 = scmp.eq.s32.totalorder %s18, 0
      %p60 = por %p58, %p59
      %p61 = scmp.ne.s32.totalorder %s49, %s50
      %p62 = scmp.eq.s32.totalorder %s19, 1
      %p63 = por %p61, %p62
      %p65 = scmp.ne.s32.totalorder %s50, %s64
      %p66 = scmp.eq.s32.totalorder %s19, 0
      %p67 = por %p65, %p66
      %s69 = sadd.s32 %s68, 1
      %p72 = scmp.eq.s32.totalorder %s13, 1
      %p73 = scmp.ne.s32.totalorder %s68, %s70
      %p74 = scmp.eq.s32.totalorder %s13, 0
      %p75 = por %p73, %p74
      %p76 = scmp.ne.s32.totalorder %s68, %s70
      %p77 = scmp.eq.s32.totalorder %s18, 1
      %p78 = por %p76, %p77
      %p79 = scmp.ne.s32.totalorder %s70, %s71
      %p80 = scmp.eq.s32.totalorder %s18, 0
      %p81 = por %p79, %p80
      %p82 = scmp.ne.s32.totalorder %s70, %s71
      %p83 = scmp.eq.s32.totalorder %s19, 1
      %p84 = por %p82, %p83
      %p86 = scmp.ne.s32.totalorder %s71, %s85
      %p87 = scmp.eq.s32.totalorder %s19, 0
      %p88 = por %p86, %p87
      %s89 = ssub.s32 %s13, %s20
      %p90 = scmp.eq.s32.totalorder %s89, 0
      %s92 = sadd.s32 %s91, 1
      %s93 = scalar_select %p90, %s91, %s92
      %p96 = pneg %p90
      %p97 = scmp.eq.s32.totalorder %s13, 1
      %p98 = por %p96, %p97
      %p99 = scmp.ne.s32.totalorder %s91, %s94
      %p100 = scmp.eq.s32.totalorder %s13, 0
      %p101 = por %p99, %p100
      %p102 = scmp.ne.s32.totalorder %s91, %s94
      %p103 = scmp.eq.s32.totalorder %s18, 1
      %p104 = por %p102, %p103
      %p105 = scmp.ne.s32.totalorder %s94, %s95
      %p106 = scmp.eq.s32.totalorder %s18, 0
      %p107 = por %p105, %p106
      %p108 = scmp.ne.s32.totalorder %s94, %s95
      %p109 = scmp.eq.s32.totalorder %s19, 1
      %p110 = por %p108, %p109
      %p112 = scmp.ne.s32.totalorder %s95, %s111
      %p113 = scmp.eq.s32.totalorder %s19, 0
      %p114 = por %p112, %p113
      %p115 = scmp.le.s32.totalorder 1, %s13
      %p116 = scmp.lt.s32.totalorder %s13, 3
      %p117 = pnand %p115, %p116
      %p118 = pneg %p117
      // Predicated region
      $region9: #{tpu_custom_call.1} parent=5 // pred_check
        _
      $region10: #{tpu_custom_call.1} parent=5 // pred_check_branch
        %120 = sbr.rel (%p117) target = $region12
      $region11: #{tpu_custom_call.1} parent=5 // pred_region
        %s121 = ssub.s32 %s13, 1
        // Predicated region
        $region13: #{tpu_custom_call.1} parent=11 // pred_check
          %p122 = pneg %p60
        $region14: #{tpu_custom_call.1} parent=11 // pred_check_branch
          %124 = sbr.rel (%p122) target = $region16
        $region15: #{tpu_custom_call.1} parent=11 // pred_region
          %s126 = ssub.s32 2432, 2432
          %127 = vsyncadd [#allocation3], %s126
          %s128 = sshll.u32 [#allocation2], 4
          %s129 = int_to_ptr.vmem [resolvable:$true] %s128
          %134 = dma.hbm_to_vmem [thread:$0]  %s1, 2432, %s129, [#allocation3], 128, 128, 8
        $region16: #{tpu_custom_call.1} parent=11 // pred_fallthru
          _
        // Predicated region
        $region17: #{tpu_custom_call.1} parent=11 // pred_check
          %p135 = pneg %p81
        $region18: #{tpu_custom_call.1} parent=11 // pred_check_branch
          %137 = sbr.rel (%p135) target = $region20
        $region19: #{tpu_custom_call.1} parent=11 // pred_region
          _
        $region20: #{tpu_custom_call.1} parent=11 // pred_fallthru
          _
      $region12: #{tpu_custom_call.1} parent=5 // pred_fallthru
        _
      %p138 = scmp.lt.s32.totalorder %s13, 2
      // Predicated region
      $region21: #{tpu_custom_call.1} parent=5 // pred_check
        %p139 = pneg %p138
      $region22: #{tpu_custom_call.1} parent=5 // pred_check_branch
        %141 = sbr.rel (%p139) target = $region24
      $region23: #{tpu_custom_call.1} parent=5 // pred_region
        // Predicated region
        $region25: #{tpu_custom_call.1} parent=23 // pred_check
          %p142 = pneg %p33
        $region26: #{tpu_custom_call.1} parent=23 // pred_check_branch
          %144 = sbr.rel (%p142) target = $region28
        $region27: #{tpu_custom_call.1} parent=23 // pred_region
          %p145 = scmp.lt.s32.totalorder %s13, 1
          %s146 = scalar_select %p145, %s13, 1
          %s147 = smul.addr %s146, 3
          %s148 = smul.addr %s147, 8
          %s149 = scalar_lea.vmem %s0, %s148
        $region28: #{tpu_custom_call.1} parent=23 // pred_fallthru
          _
      $region24: #{tpu_custom_call.1} parent=5 // pred_fallthru
        _
      %p150 = scmp.le.s32.totalorder 1, %s13
      %p151 = scmp.lt.s32.totalorder %s13, 3
      %p152 = pnand %p150, %p151
      %p153 = pneg %p152
      // Predicated region
      $region29: #{tpu_custom_call.1} parent=5 // pred_check
        _
      $region30: #{tpu_custom_call.1} parent=5 // pred_check_branch
        %155 = sbr.rel (%p152) target = $region32
      $region31: #{tpu_custom_call.1} parent=5 // pred_region
        %s156 = ssub.s32 %s13, 1
        // Predicated region
        $region33: #{tpu_custom_call.1} parent=31 // pred_check
          %p157 = pneg %p60
        $region34: #{tpu_custom_call.1} parent=31 // pred_check_branch
          %159 = sbr.rel (%p157) target = $region36
        $region35: #{tpu_custom_call.1} parent=31 // pred_region
          %160 = dma.done [#allocation3], 2432
        $region36: #{tpu_custom_call.1} parent=31 // pred_fallthru
          _
        %p161 = scmp.lt.s32.totalorder %s18, 1
        %s162 = scalar_select %p161, %s18, 1
        %s163 = smul.addr %s162, 3
        %s164 = smul.addr %s163, 8
        %s165 = scalar_lea.vmem %s0, %s164
        %p166 = pneg %p39
        %p167 = pneg %p36
        %p168 = pneg %p60
        %p169 = pneg %p57
        %p170 = pneg %p81
        %p171 = pneg %p78
        %p172 = pneg %p107
        %p173 = pneg %p104
        %s174 = sand.u32 %s94, 1
        %s175 = scalar_lea.sflag [#allocation4], %s174
        %s176 = sand.u32 %s94, 1
        %s177 = smul.addr %s176, 16
        %s178 = scalar_lea.vmem [#allocation5], %s177
        %p179 = scmp.lt.s32.totalorder %s18, 1
        %s180 = scalar_select %p179, %s18, 1
        %s181 = smul.addr %s180, 3
        %s182 = smul.addr %s181, 8
        %s183 = scalar_lea.vmem %s0, %s182
        %v184 = vld [vmem:[%s183] sm:$0x7f]
        %v185 = vld [vmem:[%s183 + $0x4] sm:$0x7f]
        %v186 = vld [vmem:[%s183 + $0x8] sm:$0x7f]
        %v187 = vld [vmem:[%s183 + $0xc] sm:$0x7f]
        %189 = vrot.lane.b32.xlu0 %v184, 116
        %v190 = vpop.permute.xlu0 %189
        %192 = vrot.lane.b32.xlu0 %v184, 104
        %v193 = vpop.permute.xlu0 %192
        %195 = vrot.lane.b32.xlu0 %v184, 92
        %v196 = vpop.permute.xlu0 %195
        %199 = vrot.lane.b32.xlu0 %v185, 116
        %v200 = vpop.permute.xlu0 %199
        %202 = vrot.lane.b32.xlu0 %v185, 104
        %v203 = vpop.permute.xlu0 %202
        %205 = vrot.lane.b32.xlu0 %v185, 92
        %v206 = vpop.permute.xlu0 %205
        %209 = vrot.lane.b32.xlu0 %v186, 116
        %v210 = vpop.permute.xlu0 %209
        %212 = vrot.lane.b32.xlu0 %v186, 104
        %v213 = vpop.permute.xlu0 %212
        %215 = vrot.lane.b32.xlu0 %v186, 92
        %v216 = vpop.permute.xlu0 %215
        %219 = vrot.lane.b32.xlu0 %v187, 116
        %v220 = vpop.permute.xlu0 %219
        %222 = vrot.lane.b32.xlu0 %v187, 104
        %v223 = vpop.permute.xlu0 %222
        %225 = vrot.lane.b32.xlu0 %v187, 92
        %v226 = vpop.permute.xlu0 %225
        %v228 = vcombine.low %v184, %v193
        %v229 = vcombine.high %v184, %v193
        %v231 = vunpack.c.l.s4 1983009808
        %v232 = vunpack.c.0.s8 %v231
        %v233 = vlaneseq
        %v234 = vshrl.u32 %v233, 7
        %v235 = vsub.s32 %v232, %v234
        %v236 = vrot.slane %v228, %v235
        %v238 = vunpack.c.l.s4 1983009808
        %v239 = vunpack.c.0.s8 %v238
        %v240 = vlaneseq
        %v241 = vshrl.u32 %v240, 7
        %v242 = vsub.s32 %v239, %v241
        %v243 = vrot.slane %v229, %v242
        %v244 = vcombine.low %v190, %v196
        %v245 = vcombine.high %v190, %v196
        %v247 = vunpack.c.l.s4 1983009808
        %v248 = vunpack.c.0.s8 %v247
        %v249 = vlaneseq
        %v250 = vshrl.u32 %v249, 7
        %v251 = vsub.s32 %v248, %v250
        %v252 = vrot.slane %v244, %v251
        %v254 = vunpack.c.l.s4 1983009808
        %v255 = vunpack.c.0.s8 %v254
        %v256 = vlaneseq
        %v257 = vshrl.u32 %v256, 7
        %v258 = vsub.s32 %v255, %v257
        %v259 = vrot.slane %v245, %v258
        %v260 = vcombine.low %v185, %v203
        %v261 = vcombine.high %v185, %v203
        %v263 = vunpack.c.l.s4 1983009808
        %v264 = vunpack.c.0.s8 %v263
        %v265 = vlaneseq
        %v266 = vshrl.u32 %v265, 7
        %v267 = vsub.s32 %v264, %v266
        %v268 = vrot.slane %v260, %v267
        %v270 = vunpack.c.l.s4 1983009808
        %v271 = vunpack.c.0.s8 %v270
        %v272 = vlaneseq
        %v273 = vshrl.u32 %v272, 7
        %v274 = vsub.s32 %v271, %v273
        %v275 = vrot.slane %v261, %v274
        %v276 = vcombine.low %v200, %v206
        %v277 = vcombine.high %v200, %v206
        %v279 = vunpack.c.l.s4 1983009808
        %v280 = vunpack.c.0.s8 %v279
        %v281 = vlaneseq
        %v282 = vshrl.u32 %v281, 7
        %v283 = vsub.s32 %v280, %v282
        %v284 = vrot.slane %v276, %v283
        %v286 = vunpack.c.l.s4 1983009808
        %v287 = vunpack.c.0.s8 %v286
        %v288 = vlaneseq
        %v289 = vshrl.u32 %v288, 7
        %v290 = vsub.s32 %v287, %v289
        %v291 = vrot.slane %v277, %v290
        %v292 = vcombine.low %v236, %v252
        %v293 = vcombine.high %v236, %v252
        %v295 = vunpack.c.l.s4 1934713408
        %v296 = vunpack.c.0.s8 %v295
        %v297 = vlaneseq
        %v298 = vshrl.u32 %v297, 7
        %v299 = vsub.s32 %v296, %v298
        %v300 = vrot.slane %v292, %v299
        %v302 = vunpack.c.l.s4 1934713408
        %v303 = vunpack.c.0.s8 %v302
        %v304 = vlaneseq
        %v305 = vshrl.u32 %v304, 7
        %v306 = vsub.s32 %v303, %v305
        %v307 = vrot.slane %v293, %v306
        %v308 = vcombine.low %v243, %v259
        %v309 = vcombine.high %v243, %v259
        %v311 = vunpack.c.l.s4 1934713408
        %v312 = vunpack.c.0.s8 %v311
        %v313 = vlaneseq
        %v314 = vshrl.u32 %v313, 7
        %v315 = vsub.s32 %v312, %v314
        %v316 = vrot.slane %v308, %v315
        %v318 = vunpack.c.l.s4 1934713408
        %v319 = vunpack.c.0.s8 %v318
        %v320 = vlaneseq
        %v321 = vshrl.u32 %v320, 7
        %v322 = vsub.s32 %v319, %v321
        %v323 = vrot.slane %v309, %v322
        %v324 = vcombine.low %v268, %v284
        %v325 = vcombine.high %v268, %v284
        %v327 = vunpack.c.l.s4 1934713408
        %v328 = vunpack.c.0.s8 %v327
        %v329 = vlaneseq
        %v330 = vshrl.u32 %v329, 7
        %v331 = vsub.s32 %v328, %v330
        %v332 = vrot.slane %v324, %v331
        %v334 = vunpack.c.l.s4 1934713408
        %v335 = vunpack.c.0.s8 %v334
        %v336 = vlaneseq
        %v337 = vshrl.u32 %v336, 7
        %v338 = vsub.s32 %v335, %v337
        %v339 = vrot.slane %v325, %v338
        %v340 = vcombine.low %v275, %v291
        %v341 = vcombine.high %v275, %v291
        %v343 = vunpack.c.l.s4 1934713408
        %v344 = vunpack.c.0.s8 %v343
        %v345 = vlaneseq
        %v346 = vshrl.u32 %v345, 7
        %v347 = vsub.s32 %v344, %v346
        %v348 = vrot.slane %v340, %v347
        %v350 = vunpack.c.l.s4 1934713408
        %v351 = vunpack.c.0.s8 %v350
        %v352 = vlaneseq
        %v353 = vshrl.u32 %v352, 7
        %v354 = vsub.s32 %v351, %v353
        %v355 = vrot.slane %v341, %v354
        %v356 = vcombine.low %v300, %v332
        %v357 = vcombine.high %v300, %v332
        %v358 = vcombine.low %v307, %v339
        %v359 = vcombine.high %v307, %v339
        %v360 = vcombine.low %v316, %v348
        %v361 = vcombine.high %v316, %v348
        %v362 = vcombine.low %v323, %v355
        %v363 = vcombine.low %v186, %v213
        %v364 = vcombine.high %v186, %v213
        %v366 = vunpack.c.l.s4 1983009808
        %v367 = vunpack.c.0.s8 %v366
        %v368 = vlaneseq
        %v369 = vshrl.u32 %v368, 7
        %v370 = vsub.s32 %v367, %v369
        %v371 = vrot.slane %v363, %v370
        %v373 = vunpack.c.l.s4 1983009808
        %v374 = vunpack.c.0.s8 %v373
        %v375 = vlaneseq
        %v376 = vshrl.u32 %v375, 7
        %v377 = vsub.s32 %v374, %v376
        %v378 = vrot.slane %v364, %v377
        %v379 = vcombine.low %v210, %v216
        %v380 = vcombine.high %v210, %v216
        %v382 = vunpack.c.l.s4 1983009808
        %v383 = vunpack.c.0.s8 %v382
        %v384 = vlaneseq
        %v385 = vshrl.u32 %v384, 7
        %v386 = vsub.s32 %v383, %v385
        %v387 = vrot.slane %v379, %v386
        %v389 = vunpack.c.l.s4 1983009808
        %v390 = vunpack.c.0.s8 %v389
        %v391 = vlaneseq
        %v392 = vshrl.u32 %v391, 7
        %v393 = vsub.s32 %v390, %v392
        %v394 = vrot.slane %v380, %v393
        %v395 = vcombine.low %v187, %v223
        %v396 = vcombine.high %v187, %v223
        %v398 = vunpack.c.l.s4 1983009808
        %v399 = vunpack.c.0.s8 %v398
        %v400 = vlaneseq
        %v401 = vshrl.u32 %v400, 7
        %v402 = vsub.s32 %v399, %v401
        %v403 = vrot.slane %v395, %v402
        %v405 = vunpack.c.l.s4 1983009808
        %v406 = vunpack.c.0.s8 %v405
        %v407 = vlaneseq
        %v408 = vshrl.u32 %v407, 7
        %v409 = vsub.s32 %v406, %v408
        %v410 = vrot.slane %v396, %v409
        %v411 = vcombine.low %v220, %v226
        %v412 = vcombine.high %v220, %v226
        %v414 = vunpack.c.l.s4 1983009808
        %v415 = vunpack.c.0.s8 %v414
        %v416 = vlaneseq
        %v417 = vshrl.u32 %v416, 7
        %v418 = vsub.s32 %v415, %v417
        %v419 = vrot.slane %v411, %v418
        %v421 = vunpack.c.l.s4 1983009808
        %v422 = vunpack.c.0.s8 %v421
        %v423 = vlaneseq
        %v424 = vshrl.u32 %v423, 7
        %v425 = vsub.s32 %v422, %v424
        %v426 = vrot.slane %v412, %v425
        %v427 = vcombine.low %v371, %v387
        %v428 = vcombine.high %v371, %v387
        %v430 = vunpack.c.l.s4 1934713408
        %v431 = vunpack.c.0.s8 %v430
        %v432 = vlaneseq
        %v433 = vshrl.u32 %v432, 7
        %v434 = vsub.s32 %v431, %v433
        %v435 = vrot.slane %v427, %v434
        %v437 = vunpack.c.l.s4 1934713408
        %v438 = vunpack.c.0.s8 %v437
        %v439 = vlaneseq
        %v440 = vshrl.u32 %v439, 7
        %v441 = vsub.s32 %v438, %v440
        %v442 = vrot.slane %v428, %v441
        %v443 = vcombine.low %v378, %v394
        %v444 = vcombine.high %v378, %v394
        %v446 = vunpack.c.l.s4 1934713408
        %v447 = vunpack.c.0.s8 %v446
        %v448 = vlaneseq
        %v449 = vshrl.u32 %v448, 7
        %v450 = vsub.s32 %v447, %v449
        %v451 = vrot.slane %v443, %v450
        %v453 = vunpack.c.l.s4 1934713408
        %v454 = vunpack.c.0.s8 %v453
        %v455 = vlaneseq
        %v456 = vshrl.u32 %v455, 7
        %v457 = vsub.s32 %v454, %v456
        %v458 = vrot.slane %v444, %v457
        %v459 = vcombine.low %v403, %v419
        %v460 = vcombine.high %v403, %v419
        %v462 = vunpack.c.l.s4 1934713408
        %v463 = vunpack.c.0.s8 %v462
        %v464 = vlaneseq
        %v465 = vshrl.u32 %v464, 7
        %v466 = vsub.s32 %v463, %v465
        %v467 = vrot.slane %v459, %v466
        %v469 = vunpack.c.l.s4 1934713408
        %v470 = vunpack.c.0.s8 %v469
        %v471 = vlaneseq
        %v472 = vshrl.u32 %v471, 7
        %v473 = vsub.s32 %v470, %v472
        %v474 = vrot.slane %v460, %v473
        %v475 = vcombine.low %v410, %v426
        %v476 = vcombine.high %v410, %v426
        %v478 = vunpack.c.l.s4 1934713408
        %v479 = vunpack.c.0.s8 %v478
        %v480 = vlaneseq
        %v481 = vshrl.u32 %v480, 7
        %v482 = vsub.s32 %v479, %v481
        %v483 = vrot.slane %v475, %v482
        %v485 = vunpack.c.l.s4 1934713408
        %v486 = vunpack.c.0.s8 %v485
        %v487 = vlaneseq
        %v488 = vshrl.u32 %v487, 7
        %v489 = vsub.s32 %v486, %v488
        %v490 = vrot.slane %v476, %v489
        %v491 = vcombine.low %v435, %v467
        %v492 = vcombine.high %v435, %v467
        %v493 = vcombine.low %v442, %v474
        %v494 = vcombine.high %v442, %v474
        %v495 = vcombine.low %v451, %v483
        %v496 = vcombine.high %v451, %v483
        %v497 = vcombine.low %v458, %v490
        %500 = vrot.lane.b32.xlu0 %v357, 21
        %v501 = vpop.permute.xlu0 %500
        %502 = vrot.lane.b32.xlu0 %v492, 21
        %v503 = vpop.permute.xlu0 %502
        %508 = vrot.lane.b32.xlu0 %v358, 42
        %v509 = vpop.permute.xlu0 %508
        %510 = vrot.lane.b32.xlu0 %v493, 42
        %v511 = vpop.permute.xlu0 %510
        %516 = vrot.lane.b32.xlu0 %v359, 63
        %v517 = vpop.permute.xlu0 %516
        %518 = vrot.lane.b32.xlu0 %v494, 63
        %v519 = vpop.permute.xlu0 %518
        %524 = vrot.lane.b32.xlu0 %v360, 84
        %v525 = vpop.permute.xlu0 %524
        %526 = vrot.lane.b32.xlu0 %v495, 84
        %v527 = vpop.permute.xlu0 %526
        %532 = vrot.lane.b32.xlu0 %v361, 105
        %v533 = vpop.permute.xlu0 %532
        %534 = vrot.lane.b32.xlu0 %v496, 105
        %v535 = vpop.permute.xlu0 %534
        %540 = vrot.lane.b32.xlu0 %v362, 126
        %v541 = vpop.permute.xlu0 %540
        %542 = vrot.lane.b32.xlu0 %v497, 126
        %v543 = vpop.permute.xlu0 %542
        %vm546 = vcmask 171008
        %v547 = vsel %vm546, %v356, %v501
        %v548 = vsel %vm546, %v491, %v503
        %vm549 = vcmask 343040
        %v550 = vsel %vm549, %v547, %v509
        %v551 = vsel %vm549, %v548, %v511
        %vm552 = vcmask 515072
        %v553 = vsel %vm552, %v550, %v517
        %v554 = vsel %vm552, %v551, %v519
        %vm555 = vcmask 687104
        %v556 = vsel %vm555, %v553, %v525
        %v557 = vsel %vm555, %v554, %v527
        %vm558 = vcmask 859136
        %v559 = vsel %vm558, %v556, %v533
        %v560 = vsel %vm558, %v557, %v535
        %vm561 = vcmask 1031168
        %v562 = vsel %vm561, %v559, %v541
        %v563 = vsel %vm561, %v560, %v543
        %v564 = vld [vmem:[#allocation2] sm:$0xff]
        %v565 = vld [vmem:[#allocation2 + $0x8] sm:$0xff]
        %v566 = vld [vmem:[#allocation2 + $0x10] sm:$0xff]
        %v567 = vld [vmem:[#allocation2 + $0x18] sm:$0xff]
        %v568 = vld [vmem:[#allocation2 + $0x20] sm:$0xff]
        %v569 = vld [vmem:[#allocation2 + $0x28] sm:$0xff]
        %v570 = vld [vmem:[#allocation2 + $0x30] sm:$0xff]
        %v571 = vld [vmem:[#allocation2 + $0x38] sm:$0xff]
        %v572 = vld [vmem:[#allocation2 + $0x40] sm:$0xff]
        %v573 = vld [vmem:[#allocation2 + $0x48] sm:$0xff]
        %v574 = vld [vmem:[#allocation2 + $0x50] sm:$0xff]
        %v575 = vld [vmem:[#allocation2 + $0x58] sm:$0xff]
        %v576 = vld [vmem:[#allocation2 + $0x60] sm:$0xff]
        %v577 = vld [vmem:[#allocation2 + $0x68] sm:$0xff]
        %v578 = vld [vmem:[#allocation2 + $0x70] sm:$0xff]
        %v579 = vld [vmem:[#allocation2 + $0x78] sm:$0xff]
        %v580 = vld [vmem:[#allocation2 + $0x80] sm:$0xff]
        %v581 = vld [vmem:[#allocation2 + $0x88] sm:$0xff]
        %v582 = vld [vmem:[#allocation2 + $0x90] sm:$0x7]
        %v583 = vld [vmem:[%s2] sm:$0x1]
        %v584 = vlaneseq
        %v585 = vshrl.u32 %v584, 7
        %v586 = vsub.s32 0, %v585
        %v587 = vrot.slane %v583, %v586
        %vm588 = vcmask 154624
        %v589 = vsel %vm588, %v541, 0
        %v591 = vsel %vm588, %v543, 0
        %vm593 = vcmask 1042432
        %v595 = vsel %vm593, %v582, 0
        %597 = vmatprep.subr.mxu0 0.0
        %598 = vmatpush1.msra.mxu0 %v564
        %599 = vmatprep.subr.mxu0 0.0
        %600 = vmatpush1.msra.mxu0 %v565
        %601 = vmatprep.subr.mxu0 0.0
        %602 = vmatpush1.msra.mxu0 %v566
        %603 = vmatprep.subr.mxu0 0.0
        %604 = vmatpush1.msra.mxu0 %v567
        %605 = vmatprep.subr.mxu0 0.0
        %606 = vmatpush1.msra.mxu0 %v568
        %607 = vmatprep.subr.mxu0 0.0
        %608 = vmatpush1.msra.mxu0 %v569
        %609 = vmatprep.subr.mxu0 0.0
        %610 = vmatpush1.msra.mxu0 %v570
        %611 = vmatprep.subr.mxu0 0.0
        %612 = vmatpush1.msra.mxu0 %v571
        %613 = vmatprep.subr.mxu0 0.0
        %614 = vmatpush1.msra.mxu0 %v572
        %615 = vmatprep.subr.mxu0 0.0
        %616 = vmatpush1.msra.mxu0 %v573
        %617 = vmatprep.subr.mxu0 0.0
        %618 = vmatpush1.msra.mxu0 %v574
        %619 = vmatprep.subr.mxu0 0.0
        %620 = vmatpush1.msra.mxu0 %v575
        %621 = vmatprep.subr.mxu0 0.0
        %622 = vmatpush1.msra.mxu0 %v576
        %623 = vmatprep.subr.mxu0 0.0
        %624 = vmatpush1.msra.mxu0 %v577
        %625 = vmatprep.subr.mxu0 0.0
        %626 = vmatpush1.msra.mxu0 %v578
        %627 = vmatprep.subr.mxu0 0.0
        %628 = vmatpush1.msra.mxu0 %v579
        %629 = vmatprep.subr.mxu0 0.0
        %630 = vmatpush1.msra.mxu0 %v580
        %631 = vmatprep.subr.mxu0 0.0
        %632 = vmatpush1.msra.mxu0 %v581
        %633 = vmatprep.subr.mxu0 0.0
        %634 = vmatpush1.msra.mxu0 %v595
        %635 = vmatprep.subr.mxu0 0.0
        %636 = vmatpush1.msra.mxu0 0.0
        %637 = vmatprep.subr.mxu0 0.0
        %638 = vmatpush1.msra.mxu0 0.0
        %639 = vmatprep.subr.mxu0 0.0
        %640 = vmatpush1.msra.mxu0 0.0
        %641 = vmatprep.subr.mxu0 0.0
        %642 = vmatpush1.msra.mxu0 0.0
        %643 = vmatprep.subr.mxu0 0.0
        %644 = vmatpush1.msra.mxu0 0.0
        %645 = vmatprep.subr.mxu0 0.0
        %646 = vmatpush1.msra.mxu0 0.0
        %647 = vmatprep.subr.mxu0 0.0
        %648 = vmatpush1.msra.mxu0 0.0
        %649 = vmatprep.subr.mxu0 0.0
        %650 = vmatpush1.msra.mxu0 0.0
        %651 = vmatprep.subr.mxu0 0.0
        %652 = vmatpush1.msra.mxu0 0.0
        %653 = vmatprep.subr.mxu0 0.0
        %654 = vmatpush1.msra.mxu0 0.0
        %655 = vmatprep.subr.mxu0 0.0
        %656 = vmatpush1.msra.mxu0 0.0
        %657 = vmatprep.subr.mxu0 0.0
        %658 = vmatpush1.msra.mxu0 0.0
        %659 = vmatprep.subr.mxu0 0.0
        %660 = vmatpush1.msra.mxu0 0.0
        %661 = vmatprep.mubr.f32.mxu0 %v589
        %662 = vmatmul.mubr.f32.gmra.mrb[0].mxu0 %v562
        %v663 = vpop.f32.mrb[0].mxu0
        %v664 = vadd.f32 %v587, %v663
        %v665 = vpop.f32.mrb[0].mxu0
        %666 = vmatprep.mubr.f32.mxu0 %v591
        %667 = vmatmul.mubr.f32.gmra.mrb[0].mxu0 %v563
        %v668 = vpop.f32.mrb[0].mxu0
        %v669 = vadd.f32 %v587, %v668
        %v670 = vpop.f32.mrb[0].mxu0
        %671 = vdwg.mxu0
        %672 = vadd.xlane.f32.xlu0 %v664
        %v673 = vpop.xlane.xlu0 %672
        %674 = vadd.xlane.f32.xlu0 %v669
        %v675 = vpop.xlane.xlu0 %674
        %v676 = vrcp.pop 128.0
        %v677 = vmul.f32 %v673, %v676
        %v678 = vmul.f32 %v675, %v676
        %v679 = vsub.f32 %v664, %v677
        %v680 = vsub.f32 %v669, %v678
        %v681 = vmul.f32 %v679, %v679
        %v682 = vmul.f32 %v680, %v680
        %683 = vadd.xlane.f32.xlu0 %v681
        %v684 = vpop.xlane.xlu0 %683
        %685 = vadd.xlane.f32.xlu0 %v682
        %v686 = vpop.xlane.xlu0 %685
        %v687 = vmul.f32 %v684, %v676
        %v688 = vmul.f32 %v686, %v676
        %v689 = vadd.f32 %v687, 1e-05
        %v690 = vadd.f32 %v688, 1e-05
        %v691 = vrsqrt.pop %v689
        %v692 = vrsqrt.pop %v690
        %v693 = vmul.f32 %v679, %v691
        %v694 = vmul.f32 %v680, %v692
        %v695 = vld [vmem:[%s2 + $0x1] sm:$0x1]
        %v696 = vlaneseq
        %v697 = vshrl.u32 %v696, 7
        %v698 = vsub.s32 0, %v697
        %v699 = vrot.slane %v695, %v698
        %v700 = vmul.f32 %v693, %v699
        %v701 = vmul.f32 %v694, %v699
        %v702 = vld [vmem:[%s2 + $0x2] sm:$0x1]
        %v703 = vlaneseq
        %v704 = vshrl.u32 %v703, 7
        %v705 = vsub.s32 0, %v704
        %v706 = vrot.slane %v702, %v705
        %v707 = vadd.f32 %v700, %v706
        %v708 = vadd.f32 %v701, %v706
        %709 = vst [vmem:[%s178] sm:$0xff] %v707
        %710 = vst [vmem:[%s178 + $0x8] sm:$0xff] %v708
        %s711 = sand.u32 %s94, 1
        %s712 = scalar_lea.sflag [#allocation4], %s711
        %s713 = sand.u32 %s94, 1
        %s714 = smul.addr %s713, 16
        %s715 = scalar_lea.vmem [#allocation5], %s714
        // Predicated region
        $region37: #{tpu_custom_call.1} parent=31 // pred_check
          %p716 = pneg %p104
        $region38: #{tpu_custom_call.1} parent=31 // pred_check_branch
          %718 = sbr.rel (%p716) target = $region40
        $region39: #{tpu_custom_call.1} parent=31 // pred_region
          %s720 = ssub.s32 256, 256
          %721 = vsyncadd %s712, %s720
          %s722 = smul.addr %s18, 2
          %s723 = smul.addr %s722, 128
          %s724 = scalar_lea.hbm %s3, %s723
          %s725 = sshll.u32 %s715, 4
          %s726 = int_to_ptr.vmem [resolvable:$true] %s725
          %731 = dma.vmem_to_hbm [thread:$0]  %s726, 256, %s724, %s712, 128, 128, 8
        $region40: #{tpu_custom_call.1} parent=31 // pred_fallthru
          _
      $region32: #{tpu_custom_call.1} parent=5 // pred_fallthru
        _
      %p732 = scmp.le.s32.totalorder 2, %s13
      // Predicated region
      $region41: #{tpu_custom_call.1} parent=5 // pred_check
        %p733 = pneg %p732
      $region42: #{tpu_custom_call.1} parent=5 // pred_check_branch
        %735 = sbr.rel (%p733) target = $region44
      $region43: #{tpu_custom_call.1} parent=5 // pred_region
        %s736 = ssub.s32 %s13, 2
        // Predicated region
        $region45: #{tpu_custom_call.1} parent=43 // pred_check
          %p737 = pneg %p110
        $region46: #{tpu_custom_call.1} parent=43 // pred_check_branch
          %739 = sbr.rel (%p737) target = $region48
        $region47: #{tpu_custom_call.1} parent=43 // pred_region
          %s740 = sand.u32 %s95, 1
          %s741 = scalar_lea.sflag [#allocation4], %s740
          %s742 = sand.u32 %s95, 1
          %s743 = smul.addr %s742, 16
          %s744 = scalar_lea.vmem [#allocation5], %s743
          %745 = dma.done %s741, 256
        $region48: #{tpu_custom_call.1} parent=43 // pred_fallthru
          _
      $region44: #{tpu_custom_call.1} parent=5 // pred_fallthru
        _
    $region6: #{tpu_custom_call.1} parent=1 // loop_footer
      %s17 = sadd.s32 1, %s13
    $region7: #{tpu_custom_call.1} parent=1 // loop_footer_branch
      %12 = sbr.rel target = $region3
    $region8: #{tpu_custom_call.1} parent=1 // loop_exit
      _
    %746 = vsyncpa [#allocation3], 1
    %s747 = scalar_lea.sflag [#allocation3], 1
    %748 = vsyncpa %s747, 1
    %749 = vsyncpa [#allocation4], 1
    %s750 = scalar_lea.sflag [#allocation4], 1
    %751 = vsyncpa %s750, 1

</llo_original>
